<compile_context>
chip_gen: v6e
topology: v6e:2x2x1
jax: 0.10.0
libtpu: 0.0.40
codegen_flags: <defaults>
</compile_context>

<pallas_src>
import functools
import math

import jax
import jax.numpy as jnp
from jax.experimental import pallas as pl
from jax.experimental.pallas import tpu as pltpu


# Aim for DMA chunks of roughly this many bytes: a few MiB keeps HBM busy
# without excessive descriptor / semaphore overhead.
_CHUNK_TARGET_BYTES = 4 << 20
# Below this, custom-call launch costs more than the copy itself -> bypass.
_SMALL_COPY_BYTES = 1 << 20


@functools.lru_cache(maxsize=1)
def _tpu_copy_params():
    """Generation-aware (max in-flight DMA chunks, #TensorCore programs)."""
    try:
        kind = jax.devices()[0].device_kind.lower()
    except Exception:
        return 4, 1
    if "v7" in kind:
        return 8, 2        # 2 TCs, ~3.2 TB/s HBM: more outstanding DMAs + both cores.
    if "v5 lite" in kind or "v5e" in kind or "v5lite" in kind:
        return 3, 1        # ~820 GB/s HBM saturates with fewer in-flight DMAs.
    return 4, 1            # v6e / default.


def _chunk_plan(shape, n_chunks):
    """Static list of `.at[...]` index tuples, each selecting one contiguous chunk.

    An empty tuple means "the whole ref".
    """
    shape = tuple(shape)
    if not shape or n_chunks <= 1 or math.prod(shape) == 0:
        return [()]
    d0 = shape[0]
    if len(shape) >= 2 and d0 < n_chunks and shape[1] > 1:
        # Leading dim too small to provide the desired concurrency (e.g. batch=2):
        # split each leading row along axis 1 as well, keeping chunks balanced.
        k = min(-(-n_chunks // d0), shape[1])            # ceil division, capped
        d1 = shape[1]
        bounds = [(j * d1) // k for j in range(k + 1)]
        return [(i, pl.ds(lo, hi - lo))
                for i in range(d0)
                for lo, hi in zip(bounds[:-1], bounds[1:]) if hi > lo]
    n = min(n_chunks, d0)
    bounds = [(i * d0) // n for i in range(n + 1)]
    return [(pl.ds(lo, hi - lo),)
            for lo, hi in zip(bounds[:-1], bounds[1:]) if hi > lo]


@functools.lru_cache(maxsize=None)
def _make_hbm_copy(shape, dtype, n_chunks, num_programs):
    """Build (and cache) a Pallas HBM->HBM memcpy for arrays of `shape`/`dtype`.

    Never touches VMEM: issues async DMAs over contiguous chunks and waits on
    them.  With num_programs > 1 the chunks are statically round-robined over a
    grid=(num_programs,) "parallel" axis so both v7x TensorCores issue DMAs.
    """
    shape = tuple(shape)
    dtype = jnp.dtype(dtype)
    plan = _chunk_plan(shape, n_chunks)
    n = len(plan)
    num_programs = max(1, min(num_programs, n))
    total_bytes = math.prod(shape) * dtype.itemsize

    def _copy(x_ref, o_ref, sems, chunk_ids):
        copies = []
        for c in chunk_ids:
            idx = plan[c]
            src = x_ref.at[idx] if idx else x_ref
            dst = o_ref.at[idx] if idx else o_ref
            cp = pltpu.make_async_copy(src, dst, sems.at[c])
            cp.start()                     # issue all DMAs first (overlap in flight)
            copies.append(cp)
        for cp in copies:                  # then wait on all of them
            cp.wait()

    def kernel(x_ref, o_ref, sems):
        if num_programs == 1:
            _copy(x_ref, o_ref, sems, tuple(range(n)))
            return
        pid = pl.program_id(0)
        for p in range(num_programs):
            mine = tuple(c for c in range(n) if c % num_programs == p)

            @pl.when(pid == p)
            def _(mine=mine):
                _copy(x_ref, o_ref, sems, mine)

    kwargs = dict(
        out_shape=jax.ShapeDtypeStruct(shape, dtype),
        in_specs=[pl.BlockSpec(memory_space=pl.ANY)],
        out_specs=pl.BlockSpec(memory_space=pl.ANY),
        scratch_shapes=[pltpu.SemaphoreType.DMA((n,))],
        cost_estimate=pl.CostEstimate(
            flops=0, transcendentals=0, bytes_accessed=2 * total_bytes),
    )
    if num_programs > 1:
        kwargs["grid"] = (num_programs,)
        kwargs["compiler_params"] = pltpu.CompilerParams(
            dimension_semantics=("parallel",))
    return jax.jit(pl.pallas_call(kernel, **kwargs))


def reshape_forward(x, shape=None, batch_shape=None, materialize=False, *,
                    force_kernel=False, n_chunks=None, num_programs=None):
    """JAX/Pallas equivalent of Reshape.forward.

    Exactly one of `shape` / `batch_shape` must be given.

    materialize=False (default): the faithful module semantics — a metadata
      reshape of the contiguous buffer (XLA only inserts a relayout copy when
      the reshape actually changes the tiled layout, which is unavoidable).
    materialize=True: additionally copy the data into a fresh buffer through
      the Pallas HBM->HBM DMA memcpy kernel.  The copy runs on the source
      shape so the kernel itself never incurs a hidden relayout; small / empty
      tensors bypass the kernel launch entirely.
    """
    assert (shape is None) ^ (batch_shape is None)

    if shape is not None:
        target = (x.shape[0],) + tuple(shape)
    else:
        target = tuple(batch_shape)
    assert math.prod(x.shape) == math.prod(target), "reshape size mismatch"

    if not materialize:
        return jnp.reshape(x, target)

    total_bytes = math.prod(x.shape) * jnp.dtype(x.dtype).itemsize
    # Empty / small-tensor bypass: launch overhead would dominate the copy.
    if total_bytes == 0 or (total_bytes < _SMALL_COPY_BYTES and not force_kernel):
        return jnp.reshape(x, target)

    max_chunks, default_programs = _tpu_copy_params()
    if n_chunks is None:
        n_chunks = max(1, min(max_chunks,
                              -(-total_bytes // _CHUNK_TARGET_BYTES)))
    if num_programs is None:
        num_programs = default_programs

    copy = _make_hbm_copy(tuple(x.shape), jnp.dtype(x.dtype),
                          int(n_chunks), int(num_programs))
    return jnp.reshape(copy(x), target)


if __name__ == "__main__":
    key = jax.random.PRNGKey(0)
    # Small NCHW input, matching the PyTorch conv-style usage of the module.
    x = jax.random.normal(key, (2, 4, 16, 16), dtype=jnp.float32)

    # Faithful module semantics (metadata reshape).
    y1 = reshape_forward(x, shape=(8, 128))          # -> (2, 8, 128)
    y2 = reshape_forward(x, batch_shape=(2, 1024))   # -> (2, 1024)

    # materialize=True on a tiny tensor takes the small-tensor bypass (no kernel).
    y1_s = reshape_forward(x, shape=(8, 128), materialize=True)

    # Force the Pallas DMA memcpy kernel on the tiny inputs (single whole-buffer DMA).
    y1_k = reshape_forward(x, shape=(8, 128), materialize=True, force_kernel=True)
    y3_k = reshape_forward(x, shape=(4, 16, 16), materialize=True, force_kernel=True)

    # Larger input (16 MiB): byte-derived multi-chunk DMA copy with auto config,
    # plus the multi-program dispatch path that shards chunks over both
    # TensorCores on v7x (correct, just sequential, on single-core chips).
    xl = jax.random.normal(jax.random.PRNGKey(1), (2, 32, 256, 256),
                           dtype=jnp.float32)
    z_auto = reshape_forward(xl, batch_shape=(2, 32 * 256, 256), materialize=True)
    z_grid = reshape_forward(xl, shape=(32 * 256, 256), materialize=True,
                             n_chunks=8, num_programs=2)

    jax.block_until_ready((y1, y2, y1_s, y1_k, y3_k, z_auto, z_grid))

    ref1 = jnp.reshape(x, (2, 8, 128))
    ref2 = jnp.reshape(x, (2, 1024))
    refl = jnp.reshape(xl, (2, 32 * 256, 256))
    assert y1.shape == (2, 8, 128) and y1_k.shape == (2, 8, 128)
    assert y2.shape == (2, 1024)
    assert y3_k.shape == (2, 4, 16, 16)
    assert z_auto.shape == (2, 32 * 256, 256)
    assert z_grid.shape == (2, 32 * 256, 256)
    assert bool(jnp.array_equal(y1, ref1))
    assert bool(jnp.array_equal(y1_s, ref1))
    assert bool(jnp.array_equal(y1_k, ref1))
    assert bool(jnp.array_equal(y2, ref2))
    assert bool(jnp.array_equal(y3_k, x))
    assert bool(jnp.array_equal(z_auto, refl))
    assert bool(jnp.array_equal(z_grid, refl))

    print("KERNEL_OK")
</pallas_src>

<mosaic_0001>
module attributes {stable_mosaic.version = 11 : i64} {
  func.func @kernel(%arg0: memref<2x4x16x16xf32, #tpu.memory_space<any>>, %arg1: memref<2x4x16x16xf32, #tpu.memory_space<any>>, %arg2: memref<1x!tpu.dma_semaphore, #tpu.memory_space<semaphore_mem>>) attributes {dimension_semantics = [], scalar_prefetch = 0 : i64, scratch_operands = 1 : i64, tpu.core_type = #tpu.core_type<tc>} {
    %c0_i32 = arith.constant 0 : i32
    %0 = tpu.memref_slice %arg2[%c0_i32] : memref<1x!tpu.dma_semaphore, #tpu.memory_space<semaphore_mem>> -> memref<1x!tpu.dma_semaphore, #tpu.memory_space<semaphore_mem>>
    %1 = tpu.memref_squeeze %0 : memref<1x!tpu.dma_semaphore, #tpu.memory_space<semaphore_mem>> -> memref<!tpu.dma_semaphore, #tpu.memory_space<semaphore_mem>>
    tpu.enqueue_dma source(%arg0 : memref<2x4x16x16xf32, #tpu.memory_space<any>>) target(%arg1 : memref<2x4x16x16xf32, #tpu.memory_space<any>>) target_semaphore(%1 : memref<!tpu.dma_semaphore, #tpu.memory_space<semaphore_mem>>)
    %c0_i32_0 = arith.constant 0 : i32
    %2 = tpu.memref_slice %arg2[%c0_i32_0] : memref<1x!tpu.dma_semaphore, #tpu.memory_space<semaphore_mem>> -> memref<1x!tpu.dma_semaphore, #tpu.memory_space<semaphore_mem>>
    %3 = tpu.memref_squeeze %2 : memref<1x!tpu.dma_semaphore, #tpu.memory_space<semaphore_mem>> -> memref<!tpu.dma_semaphore, #tpu.memory_space<semaphore_mem>>
    tpu.wait_dma2 semaphore(%3 : memref<!tpu.dma_semaphore, #tpu.memory_space<semaphore_mem>>) src(%arg0 : memref<2x4x16x16xf32, #tpu.memory_space<any>>) dst(%arg1 : memref<2x4x16x16xf32, #tpu.memory_space<any>>)
    return
  }
}

</mosaic_0001>

<llo_original>
// kernel: tpu_custom_call.1
$region0: #{tpu_custom_call.1}
  #allocation0 [shape = 'u32[]', space=smem, size = 0x4, offset = 0x4, fixed_abs, tag = 'smem constant byte address 0x4 - core index']
  #allocation1 [shape = 'u32[144,128]{1,0:T(1,128)}', space=vmem, size = 0x12000, scoped, tag = 'internal scratch']
  #allocation2 [shape = 's32[1]{0}', space=sflag, size = 0x4, scoped, tag = 'scratch operand']
  #allocation3 [shape = 's32[]', space=sflag, size = 0x4, offset = 0, fixed_abs, tag = 'sflag constant byte address 0x0 - dummy sync flag']
  #allocation4 [shape = 'u32[0]{0}', space=smem, size = 0, offset = 0, fixed_abs, tag = 'smem constant byte address 0x0 - null']
  %s0 = inlined_call_operand.hbm [shape: f32[2,4,16,16], index: 0, kind: input, shape index: {}]
  %s1 = inlined_call_operand.hbm [shape: f32[2,4,16,16], index: 1, kind: output, shape index: {}]
  %s2 = sld [smem:[#allocation0]]
  $region2: #{tpu_custom_call.1} parent=0
    _
  %s4 = ssub.s32 1, %s2
  %s5 = scalar_select 0, %s4, %s2
  %s7 = sshll.u32 1, 14
  %s8 = sxor.u32 4294967295, %s7
  %12 = dma.general %s0, 2048, %s1, [#allocation2], 131072, [#allocation4], 0, 0
  %s13 = smul.u32 2, 4
  %s14 = smul.u32 %s13, 16
  %s15 = smul.u32 %s14, 1
  %s16 = sshll.u32 %s15, 4
  %17 = dma.done [#allocation2], %s16
  %18 = vsyncmov [#allocation2]
  %s19 = vpop.sfrf %18
  %p20 = scmp.eq.s32.totalorder %s19, 0
  %p21 = pneg %p20
  %23 = shalt.err (%p21)

</llo_original>
